<compile_context>
chip_gen: v6e
topology: v6e:2x2x1
jax: 0.10.0
libtpu: 0.0.40
codegen_flags: <defaults>
</compile_context>

<pallas_src>
import functools

import jax
import jax.numpy as jnp
from jax.experimental import pallas as pl
from jax.experimental.pallas import tpu as pltpu

EPS = 1e-5


def _fcnn_kernel(x_ref, w1_ref, b1_ref, gamma_ref, beta_ref, w2_ref, b2_ref,
                 out_ref, sum_ref, ssq_ref, *, batch, tile):
    p = pl.program_id(0)   # 0 = stats pass, 1 = apply pass
    i = pl.program_id(1)   # batch-tile index

    # ---- Linear(28, 10): recomputed in both passes (cheaper than spilling h)
    h = jnp.dot(x_ref[...], w1_ref[...],
                preferred_element_type=jnp.float32) + b1_ref[...]   # (tile, 10)

    @pl.when((p == 0) & (i == 0))
    def _init_stats():
        sum_ref[...] = jnp.zeros_like(sum_ref)
        ssq_ref[...] = jnp.zeros_like(ssq_ref)

    @pl.when(p == 0)
    def _accumulate_stats():
        # Mask rows past the true batch size (partial last tile).
        row = jax.lax.broadcasted_iota(jnp.int32, (tile, 1), 0) + i * tile
        hm = jnp.where(row < batch, h, 0.0)
        sum_ref[...] += jnp.sum(hm, axis=0, keepdims=True)
        ssq_ref[...] += jnp.sum(hm * hm, axis=0, keepdims=True)

    @pl.when(p == 1)
    def _apply():
        inv_n = jnp.float32(1.0 / batch)
        mean = sum_ref[...] * inv_n
        var = ssq_ref[...] * inv_n - mean * mean
        # Fold BatchNorm into one affine: y = h * scale + shift
        scale = gamma_ref[...] * jax.lax.rsqrt(var + EPS)
        shift = beta_ref[...] - mean * scale
        hn = jnp.maximum(h * scale + shift, 0.0)
        # ---- Linear(10, 1) on the VPU/XLU (w2 is a (1,10) row) ----
        out_ref[...] = (jnp.sum(hn * w2_ref[...], axis=-1, keepdims=True)
                        + b2_ref[...])


def fcnn_forward(x, params, *, tile=128):
    """x: (B, 28) float32 -> (B, 1) float32."""
    w1, b1, gamma, beta, w2, b2 = params
    B, F = x.shape
    tile = min(tile, B)            # tiny batches: one full-size block
    num_tiles = pl.cdiv(B, tile)

    def param_spec(a):
        return pl.BlockSpec(a.shape, lambda p, i: (0,) * a.ndim)

    kernel = functools.partial(_fcnn_kernel, batch=B, tile=tile)

    return pl.pallas_call(
        kernel,
        out_shape=jax.ShapeDtypeStruct((B, 1), jnp.float32),
        grid_spec=pltpu.PrefetchScalarGridSpec(
            num_scalar_prefetch=0,
            grid=(2, num_tiles),
            in_specs=[
                pl.BlockSpec((tile, F), lambda p, i: (i, 0)),   # x batch tile
                param_spec(w1), param_spec(b1), param_spec(gamma),
                param_spec(beta), param_spec(w2), param_spec(b2),
            ],
            out_specs=pl.BlockSpec((tile, 1), lambda p, i: (i, 0)),
            scratch_shapes=[
                pltpu.VMEM((1, 10), jnp.float32),   # sum(h)   over batch
                pltpu.VMEM((1, 10), jnp.float32),   # sum(h*h) over batch
            ],
        ),
        compiler_params=pltpu.CompilerParams(
            # stats pass must complete before apply pass; BN stats are a
            # global reduction -> keep both axes sequential.
            dimension_semantics=("arbitrary", "arbitrary"),
            vmem_limit_bytes=48 * 1024 * 1024,
        ),
    )(x, w1, b1, gamma, beta, w2, b2)


def init_params(key):
    """Mimics weights_init_normal:
       Linear: weight ~ N(0,1), bias = 0
       BatchNorm1d: weight ~ N(0,1), bias = 0
    W1 stored as (in, out) = (28, 10); W2 stored as a (1, 10) row."""
    k1, k2, k3 = jax.random.split(key, 3)
    w1 = jax.random.normal(k1, (28, 10), dtype=jnp.float32)
    b1 = jnp.zeros((1, 10), dtype=jnp.float32)
    gamma = jax.random.normal(k2, (1, 10), dtype=jnp.float32)
    beta = jnp.zeros((1, 10), dtype=jnp.float32)
    w2 = jax.random.normal(k3, (1, 10), dtype=jnp.float32)
    b2 = jnp.zeros((1, 1), dtype=jnp.float32)
    return (w1, b1, gamma, beta, w2, b2)


def fcnn_reference(x, params):
    """Pure-JAX reference (two-pass mean/var) for correctness checking."""
    w1, b1, gamma, beta, w2, b2 = params
    h = x @ w1 + b1
    mean = jnp.mean(h, axis=0, keepdims=True)
    var = jnp.mean((h - mean) ** 2, axis=0, keepdims=True)
    h = (h - mean) / jnp.sqrt(var + EPS)
    h = h * gamma + beta
    h = jnp.maximum(h, 0.0)
    return h @ w2.T + b2


if __name__ == "__main__":
    key = jax.random.PRNGKey(0)
    kx, kp = jax.random.split(key)

    B = 256                       # small demo batch; 2 tiles of 128 rows
    x = jax.random.normal(kx, (B, 28), dtype=jnp.float32)
    params = init_params(kp)

    out = jax.block_until_ready(fcnn_forward(x, params, tile=128))
    ref = fcnn_reference(x, params)

    assert out.shape == (B, 1)
    assert jnp.allclose(out, ref, atol=1e-3, rtol=1e-3), "mismatch vs reference"

    print("KERNEL_OK")
</pallas_src>

<mosaic_0001>
module attributes {stable_mosaic.version = 11 : i64} {
  func.func @_fcnn_kernel(%arg0: i32, %arg1: i32, %arg2: memref<128x28xf32, #tpu.memory_space<vmem>>, %arg3: memref<28x10xf32, #tpu.memory_space<vmem>>, %arg4: memref<1x10xf32, #tpu.memory_space<vmem>>, %arg5: memref<1x10xf32, #tpu.memory_space<vmem>>, %arg6: memref<1x10xf32, #tpu.memory_space<vmem>>, %arg7: memref<1x10xf32, #tpu.memory_space<vmem>>, %arg8: memref<1x1xf32, #tpu.memory_space<vmem>>, %arg9: memref<128x1xf32, #tpu.memory_space<vmem>>, %arg10: memref<1x10xf32, #tpu.memory_space<vmem>>, %arg11: memref<1x10xf32, #tpu.memory_space<vmem>>) attributes {dimension_semantics = [#tpu.dimension_semantics<arbitrary>, #tpu.dimension_semantics<arbitrary>], iteration_bounds = array<i64: 2, 2>, scalar_prefetch = 0 : i64, scratch_operands = 2 : i64, tpu.core_type = #tpu.core_type<tc>, window_params = [{transform_indices = @transform_0, window_bounds = array<i64: 128, 28>}, {pipeline_mode = #tpu.pipeline_mode<synchronous>, transform_indices = @transform_1, window_bounds = array<i64: 28, 10>}, {pipeline_mode = #tpu.pipeline_mode<synchronous>, transform_indices = @transform_2, window_bounds = array<i64: 1, 10>}, {pipeline_mode = #tpu.pipeline_mode<synchronous>, transform_indices = @transform_3, window_bounds = array<i64: 1, 10>}, {pipeline_mode = #tpu.pipeline_mode<synchronous>, transform_indices = @transform_4, window_bounds = array<i64: 1, 10>}, {pipeline_mode = #tpu.pipeline_mode<synchronous>, transform_indices = @transform_5, window_bounds = array<i64: 1, 10>}, {pipeline_mode = #tpu.pipeline_mode<synchronous>, transform_indices = @transform_6, window_bounds = array<i64: 1, 1>}, {transform_indices = @transform_7, window_bounds = array<i64: 128, 1>}]} {
    %c0 = arith.constant 0 : index
    %c0_0 = arith.constant 0 : index
    %0 = vector.load %arg2[%c0, %c0_0] : memref<128x28xf32, #tpu.memory_space<vmem>>, vector<128x28xf32>
    %c0_1 = arith.constant 0 : index
    %c0_2 = arith.constant 0 : index
    %1 = vector.load %arg3[%c0_1, %c0_2] : memref<28x10xf32, #tpu.memory_space<vmem>>, vector<28x10xf32>
    %cst = arith.constant dense<0.000000e+00> : vector<128x10xf32>
    %2 = tpu.matmul %0, %1, %cst {dimension_numbers = #tpu.dot_dimension_numbers<[1], [0], [0], [1], [0, 0, 1, 1], [], []>} : vector<128x28xf32>, vector<28x10xf32>, vector<128x10xf32> -> vector<128x10xf32>
    %c0_3 = arith.constant 0 : index
    %c0_4 = arith.constant 0 : index
    %3 = vector.load %arg4[%c0_3, %c0_4] : memref<1x10xf32, #tpu.memory_space<vmem>>, vector<1x10xf32>
    %4 = vector.broadcast %3 : vector<1x10xf32> to vector<128x10xf32>
    %5 = arith.addf %2, %4 : vector<128x10xf32>
    %c0_i32 = arith.constant 0 : i32
    %6 = arith.cmpi eq, %arg0, %c0_i32 : i32
    %c0_i32_5 = arith.constant 0 : i32
    %7 = arith.cmpi eq, %arg1, %c0_i32_5 : i32
    %8 = arith.andi %6, %7 : i1
    %9 = arith.extui %8 : i1 to i32
    %c0_i32_6 = arith.constant 0 : i32
    %10 = arith.cmpi ne, %9, %c0_i32_6 : i32
    scf.if %10 {
      %cst_10 = arith.constant 0.000000e+00 : f32
      %17 = vector.broadcast %cst_10 : f32 to vector<1x10xf32>
      %c0_11 = arith.constant 0 : index
      %c0_12 = arith.constant 0 : index
      %18 = vector.load %arg10[%c0_11, %c0_12] : memref<1x10xf32, #tpu.memory_space<vmem>>, vector<1x10xf32>
      tpu.vector_store %arg10[%c0_11, %c0_12], %17 {strides = array<i32>} : memref<1x10xf32, #tpu.memory_space<vmem>>, vector<1x10xf32>,
      %cst_13 = arith.constant 0.000000e+00 : f32
      %19 = vector.broadcast %cst_13 : f32 to vector<1x10xf32>
      %c0_14 = arith.constant 0 : index
      %c0_15 = arith.constant 0 : index
      %20 = vector.load %arg11[%c0_14, %c0_15] : memref<1x10xf32, #tpu.memory_space<vmem>>, vector<1x10xf32>
      tpu.vector_store %arg11[%c0_14, %c0_15], %19 {strides = array<i32>} : memref<1x10xf32, #tpu.memory_space<vmem>>, vector<1x10xf32>,
    } else {
    }
    %c0_i32_7 = arith.constant 0 : i32
    %11 = arith.cmpi eq, %arg0, %c0_i32_7 : i32
    %12 = arith.extui %11 : i1 to i32
    %c0_i32_8 = arith.constant 0 : i32
    %13 = arith.cmpi ne, %12, %c0_i32_8 : i32
    scf.if %13 {
      %17 = tpu.iota {dimensions = array<i32: 0>} : vector<128x1xi32>
      %c128_i32 = arith.constant 128 : i32
      %18 = arith.muli %arg1, %c128_i32 : i32
      %19 = vector.broadcast %18 : i32 to vector<128x1xi32>
      %20 = arith.addi %17, %19 : vector<128x1xi32>
      %c256_i32 = arith.constant 256 : i32
      %21 = vector.broadcast %c256_i32 : i32 to vector<128x1xi32>
      %22 = arith.cmpi slt, %20, %21 : vector<128x1xi32>
      %cst_10 = arith.constant 0.000000e+00 : f32
      %23 = vector.shape_cast %22 : vector<128x1xi1> to vector<128x1xi1>
      %24 = vector.broadcast %23 : vector<128x1xi1> to vector<128x10xi1>
      %25 = vector.broadcast %cst_10 : f32 to vector<128x10xf32>
      %26 = arith.select %24, %5, %25 : vector<128x10xi1>, vector<128x10xf32>
      %c0_11 = arith.constant 0 : index
      %c0_12 = arith.constant 0 : index
      %27 = vector.load %arg10[%c0_11, %c0_12] : memref<1x10xf32, #tpu.memory_space<vmem>>, vector<1x10xf32>
      %cst_13 = arith.constant dense<0.000000e+00> : vector<10xf32>
      %28 = vector.multi_reduction <add>, %26, %cst_13 [0] : vector<128x10xf32> to vector<10xf32>
      %29 = vector.shape_cast %28 : vector<10xf32> to vector<1x10xf32>
      %30 = arith.addf %27, %29 : vector<1x10xf32>
      %c0_14 = arith.constant 0 : index
      %c0_15 = arith.constant 0 : index
      %31 = vector.load %arg10[%c0_14, %c0_15] : memref<1x10xf32, #tpu.memory_space<vmem>>, vector<1x10xf32>
      tpu.vector_store %arg10[%c0_14, %c0_15], %30 {strides = array<i32>} : memref<1x10xf32, #tpu.memory_space<vmem>>, vector<1x10xf32>,
      %c0_16 = arith.constant 0 : index
      %c0_17 = arith.constant 0 : index
      %32 = vector.load %arg11[%c0_16, %c0_17] : memref<1x10xf32, #tpu.memory_space<vmem>>, vector<1x10xf32>
      %33 = arith.mulf %26, %26 : vector<128x10xf32>
      %cst_18 = arith.constant dense<0.000000e+00> : vector<10xf32>
      %34 = vector.multi_reduction <add>, %33, %cst_18 [0] : vector<128x10xf32> to vector<10xf32>
      %35 = vector.shape_cast %34 : vector<10xf32> to vector<1x10xf32>
      %36 = arith.addf %32, %35 : vector<1x10xf32>
      %c0_19 = arith.constant 0 : index
      %c0_20 = arith.constant 0 : index
      %37 = vector.load %arg11[%c0_19, %c0_20] : memref<1x10xf32, #tpu.memory_space<vmem>>, vector<1x10xf32>
      tpu.vector_store %arg11[%c0_19, %c0_20], %36 {strides = array<i32>} : memref<1x10xf32, #tpu.memory_space<vmem>>, vector<1x10xf32>,
    } else {
    }
    %c1_i32 = arith.constant 1 : i32
    %14 = arith.cmpi eq, %arg0, %c1_i32 : i32
    %15 = arith.extui %14 : i1 to i32
    %c0_i32_9 = arith.constant 0 : i32
    %16 = arith.cmpi ne, %15, %c0_i32_9 : i32
    scf.if %16 {
      %c0_10 = arith.constant 0 : index
      %c0_11 = arith.constant 0 : index
      %17 = vector.load %arg10[%c0_10, %c0_11] : memref<1x10xf32, #tpu.memory_space<vmem>>, vector<1x10xf32>
      %cst_12 = arith.constant 3.906250e-03 : f32
      %18 = vector.broadcast %cst_12 : f32 to vector<1x10xf32>
      %19 = arith.mulf %17, %18 : vector<1x10xf32>
      %c0_13 = arith.constant 0 : index
      %c0_14 = arith.constant 0 : index
      %20 = vector.load %arg11[%c0_13, %c0_14] : memref<1x10xf32, #tpu.memory_space<vmem>>, vector<1x10xf32>
      %cst_15 = arith.constant 3.906250e-03 : f32
      %21 = vector.broadcast %cst_15 : f32 to vector<1x10xf32>
      %22 = arith.mulf %20, %21 : vector<1x10xf32>
      %23 = arith.mulf %19, %19 : vector<1x10xf32>
      %24 = arith.subf %22, %23 : vector<1x10xf32>
      %c0_16 = arith.constant 0 : index
      %c0_17 = arith.constant 0 : index
      %25 = vector.load %arg5[%c0_16, %c0_17] : memref<1x10xf32, #tpu.memory_space<vmem>>, vector<1x10xf32>
      %cst_18 = arith.constant 9.99999974E-6 : f32
      %26 = vector.broadcast %cst_18 : f32 to vector<1x10xf32>
      %27 = arith.addf %24, %26 : vector<1x10xf32>
      %28 = math.rsqrt %27 : vector<1x10xf32>
      %29 = arith.mulf %25, %28 : vector<1x10xf32>
      %c0_19 = arith.constant 0 : index
      %c0_20 = arith.constant 0 : index
      %30 = vector.load %arg6[%c0_19, %c0_20] : memref<1x10xf32, #tpu.memory_space<vmem>>, vector<1x10xf32>
      %31 = arith.mulf %19, %29 : vector<1x10xf32>
      %32 = arith.subf %30, %31 : vector<1x10xf32>
      %33 = vector.broadcast %29 : vector<1x10xf32> to vector<128x10xf32>
      %34 = arith.mulf %5, %33 : vector<128x10xf32>
      %35 = vector.broadcast %32 : vector<1x10xf32> to vector<128x10xf32>
      %36 = arith.addf %34, %35 : vector<128x10xf32>
      %cst_21 = arith.constant 0.000000e+00 : f32
      %37 = vector.broadcast %cst_21 : f32 to vector<128x10xf32>
      %38 = arith.maximumf %36, %37 : vector<128x10xf32>
      %c0_22 = arith.constant 0 : index
      %c0_23 = arith.constant 0 : index
      %39 = vector.load %arg7[%c0_22, %c0_23] : memref<1x10xf32, #tpu.memory_space<vmem>>, vector<1x10xf32>
      %40 = vector.broadcast %39 : vector<1x10xf32> to vector<128x10xf32>
      %41 = arith.mulf %38, %40 : vector<128x10xf32>
      %cst_24 = arith.constant dense<0.000000e+00> : vector<128xf32>
      %42 = vector.multi_reduction <add>, %41, %cst_24 [1] : vector<128x10xf32> to vector<128xf32>
      %43 = vector.shape_cast %42 : vector<128xf32> to vector<128x1xf32>
      %c0_25 = arith.constant 0 : index
      %c0_26 = arith.constant 0 : index
      %44 = vector.load %arg8[%c0_25, %c0_26] : memref<1x1xf32, #tpu.memory_space<vmem>>, vector<1x1xf32>
      %45 = vector.broadcast %44 : vector<1x1xf32> to vector<128x1xf32>
      %46 = arith.addf %43, %45 : vector<128x1xf32>
      %c0_27 = arith.constant 0 : index
      %c0_28 = arith.constant 0 : index
      %47 = vector.load %arg9[%c0_27, %c0_28] : memref<128x1xf32, #tpu.memory_space<vmem>>, vector<128x1xf32>
      tpu.vector_store %arg9[%c0_27, %c0_28], %46 {strides = array<i32>} : memref<128x1xf32, #tpu.memory_space<vmem>>, vector<128x1xf32>,
    } else {
    }
    return
  }
  func.func @transform_0(%arg0: i32, %arg1: i32) -> (i32, i32) {
    %c0_i32 = arith.constant 0 : i32
    %c0_i32_0 = arith.constant 0 : i32
    return %arg1, %c0_i32 : i32, i32
  }
  func.func @transform_1(%arg0: i32, %arg1: i32) -> (i32, i32) {
    %c0_i32 = arith.constant 0 : i32
    %c0_i32_0 = arith.constant 0 : i32
    %c0_i32_1 = arith.constant 0 : i32
    return %c0_i32, %c0_i32_0 : i32, i32
  }
  func.func @transform_2(%arg0: i32, %arg1: i32) -> (i32, i32) {
    %c0_i32 = arith.constant 0 : i32
    %c0_i32_0 = arith.constant 0 : i32
    %c0_i32_1 = arith.constant 0 : i32
    return %c0_i32, %c0_i32_0 : i32, i32
  }
  func.func @transform_3(%arg0: i32, %arg1: i32) -> (i32, i32) {
    %c0_i32 = arith.constant 0 : i32
    %c0_i32_0 = arith.constant 0 : i32
    %c0_i32_1 = arith.constant 0 : i32
    return %c0_i32, %c0_i32_0 : i32, i32
  }
  func.func @transform_4(%arg0: i32, %arg1: i32) -> (i32, i32) {
    %c0_i32 = arith.constant 0 : i32
    %c0_i32_0 = arith.constant 0 : i32
    %c0_i32_1 = arith.constant 0 : i32
    return %c0_i32, %c0_i32_0 : i32, i32
  }
  func.func @transform_5(%arg0: i32, %arg1: i32) -> (i32, i32) {
    %c0_i32 = arith.constant 0 : i32
    %c0_i32_0 = arith.constant 0 : i32
    %c0_i32_1 = arith.constant 0 : i32
    return %c0_i32, %c0_i32_0 : i32, i32
  }
  func.func @transform_6(%arg0: i32, %arg1: i32) -> (i32, i32) {
    %c0_i32 = arith.constant 0 : i32
    %c0_i32_0 = arith.constant 0 : i32
    %c0_i32_1 = arith.constant 0 : i32
    return %c0_i32, %c0_i32_0 : i32, i32
  }
  func.func @transform_7(%arg0: i32, %arg1: i32) -> (i32, i32) {
    %c0_i32 = arith.constant 0 : i32
    %c0_i32_0 = arith.constant 0 : i32
    return %arg1, %c0_i32 : i32, i32
  }
}

</mosaic_0001>

<llo_original>
// kernel: tpu_custom_call.1
$region0: #{tpu_custom_call.1}
  #allocation0 [shape = 'u32[]', space=smem, size = 0x4, offset = 0x4, fixed_abs, tag = 'smem constant byte address 0x4 - core index']
  #allocation1 [shape = 'u32[144,128]{1,0:T(1,128)}', space=vmem, size = 0x12000, scoped, tag = 'internal scratch']
  #allocation2 [shape = 'f32[1,10]{1,0:T(1,128)}', space=vmem, size = 0x200, scoped, tag = 'scratch operand']
  #allocation3 [shape = 'f32[1,10]{1,0:T(1,128)}', space=vmem, size = 0x200, scoped, tag = 'scratch operand']
  #allocation4 [shape = 'f32[1,1]{1,0:T(1,128)S(1)}', space=vmem, size = 0x200, scoped, tag = 'scoped memory for tpu_custom_call.1']
  %s0 = inlined_call_operand.vmem [shape: f32[256,28], index: 0, kind: input, shape index: {}]
  %s1 = inlined_call_operand.vmem [shape: f32[28,10], index: 1, kind: input, shape index: {}]
  %s2 = inlined_call_operand.vmem [shape: f32[1,10], index: 2, kind: input, shape index: {}]
  %s3 = inlined_call_operand.vmem [shape: f32[1,10], index: 3, kind: input, shape index: {}]
  %s4 = inlined_call_operand.vmem [shape: f32[1,10], index: 4, kind: input, shape index: {}]
  %s5 = inlined_call_operand.vmem [shape: f32[1,10], index: 5, kind: input, shape index: {}]
  %s6 = inlined_call_operand.<no memory space> [shape: f32[1,1], index: 6, kind: input, shape index: {}]
  %s7 = inlined_call_operand.vmem [shape: f32[256,1], index: 7, kind: output, shape index: {}]
  %s8 = sld [smem:[#allocation0]]
  $region73: #{tpu_custom_call.1} parent=0
    _
  %s10 = ssub.s32 1, %s8
  %s11 = scalar_select 0, %s10, %s8
  %v12 = vstv %s6
  %13 = vst [vmem:[#allocation4] sm:$0x1] %v12
  loop: start=0, step=1, limit=6
  $region2: #{tpu_custom_call.1} parent=0 // loop_pre_header
    _
  $region3: #{tpu_custom_call.1} parent=0 // loop_header
    %s15 = sphi 0, %s19
    %p16 = scmp.ge.s32.totalorder %s15, 6
    %s22 = sphi 0, %s34
    %s23 = sphi 0, %s30
    %s24 = sphi 0, %s22
    %s25 = sphi 0, %s23
    %s26 = sphi 0, %s24
    %s27 = sphi 0, %s25
    %s37 = sphi 0, %s39
    %s40 = sphi 0, %s37
    %s41 = sphi 0, %s40
    %s57 = sphi 0, %s41
    %s61 = sphi 0, %s61
    %s63 = sphi 0, %s61
    %s64 = sphi 0, %s63
    %s78 = sphi 0, %s64
    %s82 = sphi 0, %s82
    %s84 = sphi 0, %s82
    %s85 = sphi 0, %s84
    %s99 = sphi 0, %s85
    %s103 = sphi 0, %s103
    %s105 = sphi 0, %s103
    %s106 = sphi 0, %s105
    %s120 = sphi 0, %s106
    %s124 = sphi 0, %s124
    %s126 = sphi 0, %s124
    %s127 = sphi 0, %s126
    %s141 = sphi 0, %s127
    %s145 = sphi 0, %s145
    %s147 = sphi 0, %s145
    %s148 = sphi 0, %s147
    %s162 = sphi 0, %s148
    %s166 = sphi 0, %s166
    %s168 = sphi 0, %s166
    %s169 = sphi 0, %s168
    %s183 = sphi 0, %s169
    %s189 = sphi 0, %s191
    %s192 = sphi 0, %s189
    %s193 = sphi 0, %s192
    %s209 = sphi 0, %s193
  $region4: #{tpu_custom_call.1} parent=0 // loop_header_branch
    %18 = sbr.rel (%p16) target = $region8
  $region5: #{tpu_custom_call.1} parent=0 // loop_body
    %s20 = ssub.s32 %s15, 1
    %s21 = ssub.s32 %s15, 2
    %s28 = sadd.s32 1, %s23
    %p29 = scmp.ge.s32.totalorder %s28, 2
    %s30 = scalar_select %p29, 0, %s28
    %s31 = sadd.s32 1, %s22
    %s32 = scalar_select %p29, %s31, %s22
    %p33 = scmp.ge.s32.totalorder %s32, 2
    %s34 = scalar_select %p33, 0, %s32
    %s35 = ssub.s32 %s23, %s30
    %p36 = scmp.eq.s32.totalorder %s35, 0
    %s38 = sadd.s32 %s37, 1
    %s39 = scalar_select %p36, %s37, %s38
    %p42 = pneg %p36
    %p43 = scmp.eq.s32.totalorder %s15, 3
    %p44 = por %p42, %p43
    %p45 = scmp.ne.s32.totalorder %s37, %s40
    %p46 = scmp.eq.s32.totalorder %s15, 0
    %p47 = por %p45, %p46
    %p48 = scmp.ne.s32.totalorder %s37, %s40
    %p49 = scmp.eq.s32.totalorder %s20, 3
    %p50 = por %p48, %p49
    %p51 = scmp.ne.s32.totalorder %s40, %s41
    %p52 = scmp.eq.s32.totalorder %s20, 0
    %p53 = por %p51, %p52
    %p54 = scmp.ne.s32.totalorder %s40, %s41
    %p55 = scmp.eq.s32.totalorder %s21, 3
    %p56 = por %p54, %p55
    %p58 = scmp.ne.s32.totalorder %s41, %s57
    %p59 = scmp.eq.s32.totalorder %s21, 0
    %p60 = por %p58, %p59
    %s62 = sadd.s32 %s61, 1
    %p65 = scmp.eq.s32.totalorder %s15, 3
    %p66 = scmp.ne.s32.totalorder %s61, %s63
    %p67 = scmp.eq.s32.totalorder %s15, 0
    %p68 = por %p66, %p67
    %p69 = scmp.ne.s32.totalorder %s61, %s63
    %p70 = scmp.eq.s32.totalorder %s20, 3
    %p71 = por %p69, %p70
    %p72 = scmp.ne.s32.totalorder %s63, %s64
    %p73 = scmp.eq.s32.totalorder %s20, 0
    %p74 = por %p72, %p73
    %p75 = scmp.ne.s32.totalorder %s63, %s64
    %p76 = scmp.eq.s32.totalorder %s21, 3
    %p77 = por %p75, %p76
    %p79 = scmp.ne.s32.totalorder %s64, %s78
    %p80 = scmp.eq.s32.totalorder %s21, 0
    %p81 = por %p79, %p80
    %s83 = sadd.s32 %s82, 1
    %p86 = scmp.eq.s32.totalorder %s15, 3
    %p87 = scmp.ne.s32.totalorder %s82, %s84
    %p88 = scmp.eq.s32.totalorder %s15, 0
    %p89 = por %p87, %p88
    %p90 = scmp.ne.s32.totalorder %s82, %s84
    %p91 = scmp.eq.s32.totalorder %s20, 3
    %p92 = por %p90, %p91
    %p93 = scmp.ne.s32.totalorder %s84, %s85
    %p94 = scmp.eq.s32.totalorder %s20, 0
    %p95 = por %p93, %p94
    %p96 = scmp.ne.s32.totalorder %s84, %s85
    %p97 = scmp.eq.s32.totalorder %s21, 3
    %p98 = por %p96, %p97
    %p100 = scmp.ne.s32.totalorder %s85, %s99
    %p101 = scmp.eq.s32.totalorder %s21, 0
    %p102 = por %p100, %p101
    %s104 = sadd.s32 %s103, 1
    %p107 = scmp.eq.s32.totalorder %s15, 3
    %p108 = scmp.ne.s32.totalorder %s103, %s105
    %p109 = scmp.eq.s32.totalorder %s15, 0
    %p110 = por %p108, %p109
    %p111 = scmp.ne.s32.totalorder %s103, %s105
    %p112 = scmp.eq.s32.totalorder %s20, 3
    %p113 = por %p111, %p112
    %p114 = scmp.ne.s32.totalorder %s105, %s106
    %p115 = scmp.eq.s32.totalorder %s20, 0
    %p116 = por %p114, %p115
    %p117 = scmp.ne.s32.totalorder %s105, %s106
    %p118 = scmp.eq.s32.totalorder %s21, 3
    %p119 = por %p117, %p118
    %p121 = scmp.ne.s32.totalorder %s106, %s120
    %p122 = scmp.eq.s32.totalorder %s21, 0
    %p123 = por %p121, %p122
    %s125 = sadd.s32 %s124, 1
    %p128 = scmp.eq.s32.totalorder %s15, 3
    %p129 = scmp.ne.s32.totalorder %s124, %s126
    %p130 = scmp.eq.s32.totalorder %s15, 0
    %p131 = por %p129, %p130
    %p132 = scmp.ne.s32.totalorder %s124, %s126
    %p133 = scmp.eq.s32.totalorder %s20, 3
    %p134 = por %p132, %p133
    %p135 = scmp.ne.s32.totalorder %s126, %s127
    %p136 = scmp.eq.s32.totalorder %s20, 0
    %p137 = por %p135, %p136
    %p138 = scmp.ne.s32.totalorder %s126, %s127
    %p139 = scmp.eq.s32.totalorder %s21, 3
    %p140 = por %p138, %p139
    %p142 = scmp.ne.s32.totalorder %s127, %s141
    %p143 = scmp.eq.s32.totalorder %s21, 0
    %p144 = por %p142, %p143
    %s146 = sadd.s32 %s145, 1
    %p149 = scmp.eq.s32.totalorder %s15, 3
    %p150 = scmp.ne.s32.totalorder %s145, %s147
    %p151 = scmp.eq.s32.totalorder %s15, 0
    %p152 = por %p150, %p151
    %p153 = scmp.ne.s32.totalorder %s145, %s147
    %p154 = scmp.eq.s32.totalorder %s20, 3
    %p155 = por %p153, %p154
    %p156 = scmp.ne.s32.totalorder %s147, %s148
    %p157 = scmp.eq.s32.totalorder %s20, 0
    %p158 = por %p156, %p157
    %p159 = scmp.ne.s32.totalorder %s147, %s148
    %p160 = scmp.eq.s32.totalorder %s21, 3
    %p161 = por %p159, %p160
    %p163 = scmp.ne.s32.totalorder %s148, %s162
    %p164 = scmp.eq.s32.totalorder %s21, 0
    %p165 = por %p163, %p164
    %s167 = sadd.s32 %s166, 1
    %p170 = scmp.eq.s32.totalorder %s15, 3
    %p171 = scmp.ne.s32.totalorder %s166, %s168
    %p172 = scmp.eq.s32.totalorder %s15, 0
    %p173 = por %p171, %p172
    %p174 = scmp.ne.s32.totalorder %s166, %s168
    %p175 = scmp.eq.s32.totalorder %s20, 3
    %p176 = por %p174, %p175
    %p177 = scmp.ne.s32.totalorder %s168, %s169
    %p178 = scmp.eq.s32.totalorder %s20, 0
    %p179 = por %p177, %p178
    %p180 = scmp.ne.s32.totalorder %s168, %s169
    %p181 = scmp.eq.s32.totalorder %s21, 3
    %p182 = por %p180, %p181
    %p184 = scmp.ne.s32.totalorder %s169, %s183
    %p185 = scmp.eq.s32.totalorder %s21, 0
    %p186 = por %p184, %p185
    %s187 = ssub.s32 %s23, %s30
    %p188 = scmp.eq.s32.totalorder %s187, 0
    %s190 = sadd.s32 %s189, 1
    %s191 = scalar_select %p188, %s189, %s190
    %p194 = pneg %p188
    %p195 = scmp.eq.s32.totalorder %s15, 3
    %p196 = por %p194, %p195
    %p197 = scmp.ne.s32.totalorder %s189, %s192
    %p198 = scmp.eq.s32.totalorder %s15, 0
    %p199 = por %p197, %p198
    %p200 = scmp.ne.s32.totalorder %s189, %s192
    %p201 = scmp.eq.s32.totalorder %s20, 3
    %p202 = por %p200, %p201
    %p203 = scmp.ne.s32.totalorder %s192, %s193
    %p204 = scmp.eq.s32.totalorder %s20, 0
    %p205 = por %p203, %p204
    %p206 = scmp.ne.s32.totalorder %s192, %s193
    %p207 = scmp.eq.s32.totalorder %s21, 3
    %p208 = por %p206, %p207
    %p210 = scmp.ne.s32.totalorder %s193, %s209
    %p211 = scmp.eq.s32.totalorder %s21, 0
    %p212 = por %p210, %p211
    %p213 = scmp.le.s32.totalorder 1, %s15
    %p214 = scmp.lt.s32.totalorder %s15, 5
    %p215 = pnand %p213, %p214
    %p216 = pneg %p215
    // Predicated region
    $region9: #{tpu_custom_call.1} parent=5 // pred_check
      _
    $region10: #{tpu_custom_call.1} parent=5 // pred_check_branch
      %218 = sbr.rel (%p215) target = $region12
    $region11: #{tpu_custom_call.1} parent=5 // pred_region
      %s219 = ssub.s32 %s15, 1
      // Predicated region
      $region13: #{tpu_custom_call.1} parent=11 // pred_check
        %p220 = pneg %p74
      $region14: #{tpu_custom_call.1} parent=11 // pred_check_branch
        %222 = sbr.rel (%p220) target = $region16
      $region15: #{tpu_custom_call.1} parent=11 // pred_region
        _
      $region16: #{tpu_custom_call.1} parent=11 // pred_fallthru
        _
      // Predicated region
      $region17: #{tpu_custom_call.1} parent=11 // pred_check
        %p223 = pneg %p95
      $region18: #{tpu_custom_call.1} parent=11 // pred_check_branch
        %225 = sbr.rel (%p223) target = $region20
      $region19: #{tpu_custom_call.1} parent=11 // pred_region
        _
      $region20: #{tpu_custom_call.1} parent=11 // pred_fallthru
        _
      // Predicated region
      $region21: #{tpu_custom_call.1} parent=11 // pred_check
        %p226 = pneg %p116
      $region22: #{tpu_custom_call.1} parent=11 // pred_check_branch
        %228 = sbr.rel (%p226) target = $region24
      $region23: #{tpu_custom_call.1} parent=11 // pred_region
        _
      $region24: #{tpu_custom_call.1} parent=11 // pred_fallthru
        _
      // Predicated region
      $region25: #{tpu_custom_call.1} parent=11 // pred_check
        %p229 = pneg %p137
      $region26: #{tpu_custom_call.1} parent=11 // pred_check_branch
        %231 = sbr.rel (%p229) target = $region28
      $region27: #{tpu_custom_call.1} parent=11 // pred_region
        _
      $region28: #{tpu_custom_call.1} parent=11 // pred_fallthru
        _
      // Predicated region
      $region29: #{tpu_custom_call.1} parent=11 // pred_check
        %p232 = pneg %p158
      $region30: #{tpu_custom_call.1} parent=11 // pred_check_branch
        %234 = sbr.rel (%p232) target = $region32
      $region31: #{tpu_custom_call.1} parent=11 // pred_region
        _
      $region32: #{tpu_custom_call.1} parent=11 // pred_fallthru
        _
      // Predicated region
      $region33: #{tpu_custom_call.1} parent=11 // pred_check
        %p235 = pneg %p179
      $region34: #{tpu_custom_call.1} parent=11 // pred_check_branch
        %237 = sbr.rel (%p235) target = $region36
      $region35: #{tpu_custom_call.1} parent=11 // pred_region
        _
      $region36: #{tpu_custom_call.1} parent=11 // pred_fallthru
        _
    $region12: #{tpu_custom_call.1} parent=5 // pred_fallthru
      _
    %p238 = scmp.lt.s32.totalorder %s15, 4
    // Predicated region
    $region37: #{tpu_custom_call.1} parent=5 // pred_check
      %p239 = pneg %p238
    $region38: #{tpu_custom_call.1} parent=5 // pred_check_branch
      %241 = sbr.rel (%p239) target = $region40
    $region39: #{tpu_custom_call.1} parent=5 // pred_region
      // Predicated region
      $region41: #{tpu_custom_call.1} parent=39 // pred_check
        %p242 = pneg %p47
      $region42: #{tpu_custom_call.1} parent=39 // pred_check_branch
        %244 = sbr.rel (%p242) target = $region44
      $region43: #{tpu_custom_call.1} parent=39 // pred_region
        %s245 = smul.u32 16, %s23
        %p246 = scmp.lt.s32.totalorder %s245, 31
        %s247 = scalar_select %p246, %s245, 31
        %s248 = smul.addr %s247, 8
        %s249 = scalar_lea.vmem %s0, %s248
        %s250 = smul.u32 16, %s23
      $region44: #{tpu_custom_call.1} parent=39 // pred_fallthru
        _
    $region40: #{tpu_custom_call.1} parent=5 // pred_fallthru
      _
    %p251 = scmp.le.s32.totalorder 1, %s15
    %p252 = scmp.lt.s32.totalorder %s15, 5
    %p253 = pnand %p251, %p252
    %p254 = pneg %p253
    // Predicated region
    $region45: #{tpu_custom_call.1} parent=5 // pred_check
      _
    $region46: #{tpu_custom_call.1} parent=5 // pred_check_branch
      %256 = sbr.rel (%p253) target = $region48
    $region47: #{tpu_custom_call.1} parent=5 // pred_region
      %s257 = ssub.s32 %s15, 1
      %s258 = smul.u32 16, %s25
      %p259 = scmp.lt.s32.totalorder %s258, 31
      %s260 = scalar_select %p259, %s258, 31
      %s261 = smul.addr %s260, 8
      %s262 = scalar_lea.vmem %s0, %s261
      %p263 = pneg %p53
      %p264 = pneg %p50
      %p265 = pneg %p74
      %p266 = pneg %p71
      %p267 = pneg %p95
      %p268 = pneg %p92
      %p269 = pneg %p116
      %p270 = pneg %p113
      %p271 = pneg %p137
      %p272 = pneg %p134
      %p273 = pneg %p158
      %p274 = pneg %p155
      %p275 = pneg %p179
      %p276 = pneg %p176
      %p277 = pneg %p205
      %p278 = pneg %p202
      %s279 = smul.u32 16, %s25
      %p280 = scmp.lt.s32.totalorder %s279, 31
      %s281 = scalar_select %p280, %s279, 31
      %s282 = smul.addr %s281, 8
      %s283 = scalar_lea.vmem %s7, %s282
      %s284 = smul.u32 16, %s25
      %p285 = scmp.lt.s32.totalorder %s284, 31
      %s286 = scalar_select %p285, %s284, 31
      %s287 = smul.addr %s286, 8
      %s288 = scalar_lea.vmem %s0, %s287
      %s289 = smul.u32 16, %s25
      %s290 = smul.u32 16, %s25
      %p291 = scmp.lt.s32.totalorder %s290, 31
      %s292 = scalar_select %p291, %s290, 31
      %s293 = smul.addr %s292, 8
      %s294 = scalar_lea.vmem %s7, %s293
      %s295 = smul.u32 16, %s25
      %v296 = vld [vmem:[%s288] sm:$0xff]
      %v297 = vld [vmem:[%s288 + $0x8] sm:$0xff]
      %v298 = vld [vmem:[%s288 + $0x10] sm:$0xff]
      %v299 = vld [vmem:[%s288 + $0x18] sm:$0xff]
      %v300 = vld [vmem:[%s288 + $0x20] sm:$0xff]
      %v301 = vld [vmem:[%s288 + $0x28] sm:$0xff]
      %v302 = vld [vmem:[%s288 + $0x30] sm:$0xff]
      %v303 = vld [vmem:[%s288 + $0x38] sm:$0xff]
      %v304 = vld [vmem:[%s288 + $0x40] sm:$0xff]
      %v305 = vld [vmem:[%s288 + $0x48] sm:$0xff]
      %v306 = vld [vmem:[%s288 + $0x50] sm:$0xff]
      %v307 = vld [vmem:[%s288 + $0x58] sm:$0xff]
      %v308 = vld [vmem:[%s288 + $0x60] sm:$0xff]
      %v309 = vld [vmem:[%s288 + $0x68] sm:$0xff]
      %v310 = vld [vmem:[%s288 + $0x70] sm:$0xff]
      %v311 = vld [vmem:[%s288 + $0x78] sm:$0xff]
      %v312 = vld [vmem:[%s1] sm:$0xff]
      %v313 = vld [vmem:[%s1 + $0x8] sm:$0xff]
      %v314 = vld [vmem:[%s1 + $0x10] sm:$0xff]
      %v315 = vld [vmem:[%s1 + $0x18] sm:$0xf]
      %v316 = vld [vmem:[%s2] sm:$0x1]
      %v318 = vlaneseq
      %v319 = vshrl.u32 %v318, 7
      %v320 = vsub.s32 0, %v319
      %v321 = vrot.slane %v316, %v320
      %vm323 = vcmask 228352
      %v325 = vsel %vm323, %v296, 0
      %v328 = vsel %vm323, %v297, 0
      %v331 = vsel %vm323, %v298, 0
      %v334 = vsel %vm323, %v299, 0
      %v337 = vsel %vm323, %v300, 0
      %v340 = vsel %vm323, %v301, 0
      %v343 = vsel %vm323, %v302, 0
      %v346 = vsel %vm323, %v303, 0
      %v349 = vsel %vm323, %v304, 0
      %v352 = vsel %vm323, %v305, 0
      %v355 = vsel %vm323, %v306, 0
      %v358 = vsel %vm323, %v307, 0
      %v361 = vsel %vm323, %v308, 0
      %v364 = vsel %vm323, %v309, 0
      %v367 = vsel %vm323, %v310, 0
      %v370 = vsel %vm323, %v311, 0
      %vm372 = vcmask 1043456
      %v374 = vsel %vm372, %v315, 0
      %376 = vmatprep.subr.mxu0 0.0
      %377 = vmatpush1.msra.mxu0 0.0
      %378 = vmatprep.subr.mxu0 0.0
      %379 = vmatpush1.msra.mxu0 0.0
      %380 = vmatprep.subr.mxu0 0.0
      %381 = vmatpush1.msra.mxu0 0.0
      %382 = vmatprep.subr.mxu0 0.0
      %383 = vmatpush1.msra.mxu0 0.0
      %384 = vmatprep.subr.mxu0 0.0
      %385 = vmatpush1.msra.mxu0 0.0
      %386 = vmatprep.subr.mxu0 0.0
      %387 = vmatpush1.msra.mxu0 0.0
      %388 = vmatprep.subr.mxu0 0.0
      %389 = vmatpush1.msra.mxu0 0.0
      %390 = vmatprep.subr.mxu0 0.0
      %391 = vmatpush1.msra.mxu0 0.0
      %392 = vmatprep.subr.mxu0 0.0
      %393 = vmatpush1.msra.mxu0 0.0
      %394 = vmatprep.subr.mxu0 0.0
      %395 = vmatpush1.msra.mxu0 0.0
      %396 = vmatprep.subr.mxu0 0.0
      %397 = vmatpush1.msra.mxu0 0.0
      %398 = vmatprep.subr.mxu0 0.0
      %399 = vmatpush1.msra.mxu0 0.0
      %400 = vmatprep.subr.mxu0 0.0
      %401 = vmatpush1.msra.mxu0 %v374
      %402 = vmatprep.subr.mxu0 0.0
      %403 = vmatpush1.msra.mxu0 %v314
      %404 = vmatprep.subr.mxu0 0.0
      %405 = vmatpush1.msra.mxu0 %v313
      %406 = vmatprep.subr.mxu0 0.0
      %407 = vmatpush1.msra.mxu0 %v312
      %408 = vmatprep.subr.mxu0 0.0
      %409 = vmatpush2.msra.mxu0 0.0
      %410 = vmatprep.subr.mxu0 0.0
      %411 = vmatpush2.msra.mxu0 0.0
      %412 = vmatprep.subr.mxu0 0.0
      %413 = vmatpush2.msra.mxu0 0.0
      %414 = vmatprep.subr.mxu0 0.0
      %415 = vmatpush2.msra.mxu0 0.0
      %416 = vmatprep.subr.mxu0 0.0
      %417 = vmatpush2.msra.mxu0 0.0
      %418 = vmatprep.subr.mxu0 0.0
      %419 = vmatpush2.msra.mxu0 0.0
      %420 = vmatprep.subr.mxu0 0.0
      %421 = vmatpush2.msra.mxu0 0.0
      %422 = vmatprep.subr.mxu0 0.0
      %423 = vmatpush2.msra.mxu0 0.0
      %424 = vmatprep.subr.mxu0 0.0
      %425 = vmatpush2.msra.mxu0 0.0
      %426 = vmatprep.subr.mxu0 0.0
      %427 = vmatpush2.msra.mxu0 0.0
      %428 = vmatprep.subr.mxu0 0.0
      %429 = vmatpush2.msra.mxu0 0.0
      %430 = vmatprep.subr.mxu0 0.0
      %431 = vmatpush2.msra.mxu0 0.0
      %432 = vmatprep.subr.mxu0 0.0
      %433 = vmatpush2.msra.mxu0 0.0
      %434 = vmatprep.subr.mxu0 0.0
      %435 = vmatpush2.msra.mxu0 0.0
      %436 = vmatprep.subr.mxu0 0.0
      %437 = vmatpush2.msra.mxu0 0.0
      %438 = vmatprep.subr.mxu0 0.0
      %439 = vmatpush2.msra.mxu0 0.0
      %440 = vmatprep.mubr.f32.mxu0 0.0
      %441 = vmatmul.mubr.f32.gmra.mxu0 %v325
      %v442 = vpop.f32.mrf.mxu0
      %v443 = vadd.f32 %v321, %v442
      %v444 = vpop.f32.mrf.mxu0
      %445 = vmatprep.mubr.f32.mxu0 0.0
      %446 = vmatmul.mubr.f32.gmra.mxu0 %v328
      %v447 = vpop.f32.mrf.mxu0
      %v448 = vadd.f32 %v321, %v447
      %v449 = vpop.f32.mrf.mxu0
      %450 = vmatprep.mubr.f32.mxu0 0.0
      %451 = vmatmul.mubr.f32.gmra.mxu0 %v331
      %v452 = vpop.f32.mrf.mxu0
      %v453 = vadd.f32 %v321, %v452
      %v454 = vpop.f32.mrf.mxu0
      %455 = vmatprep.mubr.f32.mxu0 0.0
      %456 = vmatmul.mubr.f32.gmra.mxu0 %v334
      %v457 = vpop.f32.mrf.mxu0
      %v458 = vadd.f32 %v321, %v457
      %v459 = vpop.f32.mrf.mxu0
      %460 = vmatprep.mubr.f32.mxu0 0.0
      %461 = vmatmul.mubr.f32.gmra.mxu0 %v337
      %v462 = vpop.f32.mrf.mxu0
      %v463 = vadd.f32 %v321, %v462
      %v464 = vpop.f32.mrf.mxu0
      %465 = vmatprep.mubr.f32.mxu0 0.0
      %466 = vmatmul.mubr.f32.gmra.mxu0 %v340
      %v467 = vpop.f32.mrf.mxu0
      %v468 = vadd.f32 %v321, %v467
      %v469 = vpop.f32.mrf.mxu0
      %470 = vmatprep.mubr.f32.mxu0 0.0
      %471 = vmatmul.mubr.f32.gmra.mxu0 %v343
      %v472 = vpop.f32.mrf.mxu0
      %v473 = vadd.f32 %v321, %v472
      %v474 = vpop.f32.mrf.mxu0
      %475 = vmatprep.mubr.f32.mxu0 0.0
      %476 = vmatmul.mubr.f32.gmra.mxu0 %v346
      %v477 = vpop.f32.mrf.mxu0
      %v478 = vadd.f32 %v321, %v477
      %v479 = vpop.f32.mrf.mxu0
      %480 = vmatprep.mubr.f32.mxu0 0.0
      %481 = vmatmul.mubr.f32.gmra.mxu0 %v349
      %v482 = vpop.f32.mrf.mxu0
      %v483 = vadd.f32 %v321, %v482
      %v484 = vpop.f32.mrf.mxu0
      %485 = vmatprep.mubr.f32.mxu0 0.0
      %486 = vmatmul.mubr.f32.gmra.mxu0 %v352
      %v487 = vpop.f32.mrf.mxu0
      %v488 = vadd.f32 %v321, %v487
      %v489 = vpop.f32.mrf.mxu0
      %490 = vmatprep.mubr.f32.mxu0 0.0
      %491 = vmatmul.mubr.f32.gmra.mxu0 %v355
      %v492 = vpop.f32.mrf.mxu0
      %v493 = vadd.f32 %v321, %v492
      %v494 = vpop.f32.mrf.mxu0
      %495 = vmatprep.mubr.f32.mxu0 0.0
      %496 = vmatmul.mubr.f32.gmra.mxu0 %v358
      %v497 = vpop.f32.mrf.mxu0
      %v498 = vadd.f32 %v321, %v497
      %v499 = vpop.f32.mrf.mxu0
      %500 = vmatprep.mubr.f32.mxu0 0.0
      %501 = vmatmul.mubr.f32.gmra.mxu0 %v361
      %v502 = vpop.f32.mrf.mxu0
      %v503 = vadd.f32 %v321, %v502
      %v504 = vpop.f32.mrf.mxu0
      %505 = vmatprep.mubr.f32.mxu0 0.0
      %506 = vmatmul.mubr.f32.gmra.mxu0 %v364
      %v507 = vpop.f32.mrf.mxu0
      %v508 = vadd.f32 %v321, %v507
      %v509 = vpop.f32.mrf.mxu0
      %510 = vmatprep.mubr.f32.mxu0 0.0
      %511 = vmatmul.mubr.f32.gmra.mxu0 %v367
      %v512 = vpop.f32.mrf.mxu0
      %v513 = vadd.f32 %v321, %v512
      %v514 = vpop.f32.mrf.mxu0
      %515 = vmatprep.mubr.f32.mxu0 0.0
      %516 = vmatmul.mubr.f32.gmra.mxu0 %v370
      %v517 = vpop.f32.mrf.mxu0
      %v518 = vadd.f32 %v321, %v517
      %v519 = vpop.f32.mrf.mxu0
      %520 = vdwg.mxu0
      %p521 = scmp.eq.s32.totalorder %s24, 0
      %p522 = scmp.eq.s32.totalorder %s25, 0
      %p523 = pnand %p521, %p522
      %p524 = pneg %p523
      // Predicated region
      $region49: #{tpu_custom_call.1} parent=47 // pred_check
        _
      $region50: #{tpu_custom_call.1} parent=47 // pred_check_branch
        %526 = sbr.rel (%p523) target = $region52
      $region51: #{tpu_custom_call.1} parent=47 // pred_region
        %vm527 = vcmask 73728
        %528 = vst.msk [vmem:[#allocation2] sm:$0x1] %vm527, 0.0
        %529 = vst.msk [vmem:[#allocation3] sm:$0x1] %vm527, 0.0
      $region52: #{tpu_custom_call.1} parent=47 // pred_fallthru
        _
      // Predicated region
      $region53: #{tpu_custom_call.1} parent=47 // pred_check
        %p530 = pneg %p521
      $region54: #{tpu_custom_call.1} parent=47 // pred_check_branch
        %532 = sbr.rel (%p530) target = $region56
      $region55: #{tpu_custom_call.1} parent=47 // pred_region
        %v533 = vlaneseq
        %v534 = vshrl.u32 %v533, 7
        %v535 = vadd.s32 %v534, 8
        %v536 = vadd.s32 %v534, 16
        %v537 = vadd.s32 %v534, 24
        %v538 = vadd.s32 %v534, 32
        %v539 = vadd.s32 %v534, 40
        %v540 = vadd.s32 %v534, 48
        %v541 = vadd.s32 %v534, 56
        %v542 = vadd.s32 %v534, 64
        %v543 = vadd.s32 %v534, 72
        %v544 = vadd.s32 %v534, 80
        %v545 = vadd.s32 %v534, 88
        %v546 = vadd.s32 %v534, 96
        %v547 = vadd.s32 %v534, 104
        %v548 = vadd.s32 %v534, 112
        %v549 = vadd.s32 %v534, 120
        %s550 = smul.u32 %s25, 128
        %v551 = vstv %s550
        %v552 = vadd.s32 %v534, %v551
        %v553 = vadd.s32 %v535, %v551
        %v554 = vadd.s32 %v536, %v551
        %v555 = vadd.s32 %v537, %v551
        %v556 = vadd.s32 %v538, %v551
        %v557 = vadd.s32 %v539, %v551
        %v558 = vadd.s32 %v540, %v551
        %v559 = vadd.s32 %v541, %v551
        %v560 = vadd.s32 %v542, %v551
        %v561 = vadd.s32 %v543, %v551
        %v562 = vadd.s32 %v544, %v551
        %v563 = vadd.s32 %v545, %v551
        %v564 = vadd.s32 %v546, %v551
        %v565 = vadd.s32 %v547, %v551
        %v566 = vadd.s32 %v548, %v551
        %v567 = vadd.s32 %v549, %v551
        %vm568 = vcmp.lt.s32.totalorder %v552, 256
        %vm569 = vcmp.lt.s32.totalorder %v553, 256
        %vm570 = vcmp.lt.s32.totalorder %v554, 256
        %vm571 = vcmp.lt.s32.totalorder %v555, 256
        %vm572 = vcmp.lt.s32.totalorder %v556, 256
        %vm573 = vcmp.lt.s32.totalorder %v557, 256
        %vm574 = vcmp.lt.s32.totalorder %v558, 256
        %vm575 = vcmp.lt.s32.totalorder %v559, 256
        %vm576 = vcmp.lt.s32.totalorder %v560, 256
        %vm577 = vcmp.lt.s32.totalorder %v561, 256
        %vm578 = vcmp.lt.s32.totalorder %v562, 256
        %vm579 = vcmp.lt.s32.totalorder %v563, 256
        %vm580 = vcmp.lt.s32.totalorder %v564, 256
        %vm581 = vcmp.lt.s32.totalorder %v565, 256
        %vm582 = vcmp.lt.s32.totalorder %v566, 256
        %vm583 = vcmp.lt.s32.totalorder %v567, 256
        %v584 = vsel %vm568, 1, 0
        %v585 = vsel %vm569, 1, 0
        %v586 = vsel %vm570, 1, 0
        %v587 = vsel %vm571, 1, 0
        %v588 = vsel %vm572, 1, 0
        %v589 = vsel %vm573, 1, 0
        %v590 = vsel %vm574, 1, 0
        %v591 = vsel %vm575, 1, 0
        %v592 = vsel %vm576, 1, 0
        %v593 = vsel %vm577, 1, 0
        %v594 = vsel %vm578, 1, 0
        %v595 = vsel %vm579, 1, 0
        %v596 = vsel %vm580, 1, 0
        %v597 = vsel %vm581, 1, 0
        %v598 = vsel %vm582, 1, 0
        %v599 = vsel %vm583, 1, 0
        %vm600 = vcmp.eq.s32.totalorder %v584, 1
        %vm601 = vcmp.eq.s32.totalorder %v585, 1
        %vm602 = vcmp.eq.s32.totalorder %v586, 1
        %vm603 = vcmp.eq.s32.totalorder %v587, 1
        %vm604 = vcmp.eq.s32.totalorder %v588, 1
        %vm605 = vcmp.eq.s32.totalorder %v589, 1
        %vm606 = vcmp.eq.s32.totalorder %v590, 1
        %vm607 = vcmp.eq.s32.totalorder %v591, 1
        %vm608 = vcmp.eq.s32.totalorder %v592, 1
        %vm609 = vcmp.eq.s32.totalorder %v593, 1
        %vm610 = vcmp.eq.s32.totalorder %v594, 1
        %vm611 = vcmp.eq.s32.totalorder %v595, 1
        %vm612 = vcmp.eq.s32.totalorder %v596, 1
        %vm613 = vcmp.eq.s32.totalorder %v597, 1
        %vm614 = vcmp.eq.s32.totalorder %v598, 1
        %vm615 = vcmp.eq.s32.totalorder %v599, 1
        %v616 = vsel %vm600, %v443, 0.0
        %v617 = vsel %vm601, %v448, 0.0
        %v618 = vsel %vm602, %v453, 0.0
        %v619 = vsel %vm603, %v458, 0.0
        %v620 = vsel %vm604, %v463, 0.0
        %v621 = vsel %vm605, %v468, 0.0
        %v622 = vsel %vm606, %v473, 0.0
        %v623 = vsel %vm607, %v478, 0.0
        %v624 = vsel %vm608, %v483, 0.0
        %v625 = vsel %vm609, %v488, 0.0
        %v626 = vsel %vm610, %v493, 0.0
        %v627 = vsel %vm611, %v498, 0.0
        %v628 = vsel %vm612, %v503, 0.0
        %v629 = vsel %vm613, %v508, 0.0
        %v630 = vsel %vm614, %v513, 0.0
        %v631 = vsel %vm615, %v518, 0.0
        %v632 = vld [vmem:[#allocation2] sm:$0x1]
        %vm633 = vcmask 80896
        %v634 = vsel %vm633, %v616, 0.0
        %v635 = vsel %vm633, %v617, 0.0
        %v636 = vadd.f32 %v634, %v635
        %v637 = vsel %vm633, %v618, 0.0
        %v638 = vadd.f32 %v636, %v637
        %v639 = vsel %vm633, %v619, 0.0
        %v640 = vadd.f32 %v638, %v639
        %v641 = vsel %vm633, %v620, 0.0
        %v642 = vadd.f32 %v640, %v641
        %v643 = vsel %vm633, %v621, 0.0
        %v644 = vadd.f32 %v642, %v643
        %v645 = vsel %vm633, %v622, 0.0
        %v646 = vadd.f32 %v644, %v645
        %v647 = vsel %vm633, %v623, 0.0
        %v648 = vadd.f32 %v646, %v647
        %v649 = vsel %vm633, %v624, 0.0
        %v650 = vadd.f32 %v648, %v649
        %v651 = vsel %vm633, %v625, 0.0
        %v652 = vadd.f32 %v650, %v651
        %v653 = vsel %vm633, %v626, 0.0
        %v654 = vadd.f32 %v652, %v653
        %v655 = vsel %vm633, %v627, 0.0
        %v656 = vadd.f32 %v654, %v655
        %v657 = vsel %vm633, %v628, 0.0
        %v658 = vadd.f32 %v656, %v657
        %v659 = vsel %vm633, %v629, 0.0
        %v660 = vadd.f32 %v658, %v659
        %v661 = vsel %vm633, %v630, 0.0
        %v662 = vadd.f32 %v660, %v661
        %v663 = vsel %vm633, %v631, 0.0
        %v664 = vadd.f32 %v662, %v663
        %v665 = vrot.slane %v664, 4
        %v666 = vadd.f32 %v664, %v665
        %v667 = vrot.slane %v666, 2
        %v668 = vadd.f32 %v666, %v667
        %v669 = vrot.slane %v668, 1
        %v670 = vadd.f32 %v668, %v669
        %v671 = vadd.f32 %v632, %v670
        %vm672 = vcmask 73728
        %673 = vst.msk [vmem:[#allocation2] sm:$0x1] %vm672, %v671
        %v674 = vld [vmem:[#allocation3] sm:$0x1]
        %v675 = vmul.f32 %v616, %v616
        %v676 = vmul.f32 %v617, %v617
        %v677 = vmul.f32 %v618, %v618
        %v678 = vmul.f32 %v619, %v619
        %v679 = vmul.f32 %v620, %v620
        %v680 = vmul.f32 %v621, %v621
        %v681 = vmul.f32 %v622, %v622
        %v682 = vmul.f32 %v623, %v623
        %v683 = vmul.f32 %v624, %v624
        %v684 = vmul.f32 %v625, %v625
        %v685 = vmul.f32 %v626, %v626
        %v686 = vmul.f32 %v627, %v627
        %v687 = vmul.f32 %v628, %v628
        %v688 = vmul.f32 %v629, %v629
        %v689 = vmul.f32 %v630, %v630
        %v690 = vmul.f32 %v631, %v631
        %v691 = vsel %vm633, %v675, 0.0
        %v692 = vsel %vm633, %v676, 0.0
        %v693 = vadd.f32 %v691, %v692
        %v694 = vsel %vm633, %v677, 0.0
        %v695 = vadd.f32 %v693, %v694
        %v696 = vsel %vm633, %v678, 0.0
        %v697 = vadd.f32 %v695, %v696
        %v698 = vsel %vm633, %v679, 0.0
        %v699 = vadd.f32 %v697, %v698
        %v700 = vsel %vm633, %v680, 0.0
        %v701 = vadd.f32 %v699, %v700
        %v702 = vsel %vm633, %v681, 0.0
        %v703 = vadd.f32 %v701, %v702
        %v704 = vsel %vm633, %v682, 0.0
        %v705 = vadd.f32 %v703, %v704
        %v706 = vsel %vm633, %v683, 0.0
        %v707 = vadd.f32 %v705, %v706
        %v708 = vsel %vm633, %v684, 0.0
        %v709 = vadd.f32 %v707, %v708
        %v710 = vsel %vm633, %v685, 0.0
        %v711 = vadd.f32 %v709, %v710
        %v712 = vsel %vm633, %v686, 0.0
        %v713 = vadd.f32 %v711, %v712
        %v714 = vsel %vm633, %v687, 0.0
        %v715 = vadd.f32 %v713, %v714
        %v716 = vsel %vm633, %v688, 0.0
        %v717 = vadd.f32 %v715, %v716
        %v718 = vsel %vm633, %v689, 0.0
        %v719 = vadd.f32 %v717, %v718
        %v720 = vsel %vm633, %v690, 0.0
        %v721 = vadd.f32 %v719, %v720
        %v722 = vrot.slane %v721, 4
        %v723 = vadd.f32 %v721, %v722
        %v724 = vrot.slane %v723, 2
        %v725 = vadd.f32 %v723, %v724
        %v726 = vrot.slane %v725, 1
        %v727 = vadd.f32 %v725, %v726
        %v728 = vadd.f32 %v674, %v727
        %729 = vst.msk [vmem:[#allocation3] sm:$0x1] %vm672, %v728
      $region56: #{tpu_custom_call.1} parent=47 // pred_fallthru
        _
      %p730 = scmp.eq.s32.totalorder %s24, 1
      // Predicated region
      $region57: #{tpu_custom_call.1} parent=47 // pred_check
        %p731 = pneg %p730
      $region58: #{tpu_custom_call.1} parent=47 // pred_check_branch
        %733 = sbr.rel (%p731) target = $region60
      $region59: #{tpu_custom_call.1} parent=47 // pred_region
        %v734 = vld [vmem:[#allocation2] sm:$0x1]
        %v735 = vmul.f32 %v734, 0.00390625
        %v736 = vld [vmem:[#allocation3] sm:$0x1]
        %v737 = vmul.f32 %v736, 0.00390625
        %v738 = vmul.f32 %v735, %v735
        %v739 = vsub.f32 %v737, %v738
        %v740 = vld [vmem:[%s3] sm:$0x1]
        %v741 = vadd.f32 %v739, 1e-05
        %v742 = vrsqrt.pop %v741
        %v743 = vmul.f32 %v740, %v742
        %v744 = vld [vmem:[%s4] sm:$0x1]
        %v745 = vmul.f32 %v735, %v743
        %v746 = vsub.f32 %v744, %v745
        %v748 = vlaneseq
        %v749 = vshrl.u32 %v748, 7
        %v750 = vsub.s32 0, %v749
        %v751 = vrot.slane %v743, %v750
        %v753 = vmul.f32 %v443, %v751
        %v754 = vmul.f32 %v448, %v751
        %v755 = vmul.f32 %v453, %v751
        %v756 = vmul.f32 %v458, %v751
        %v757 = vmul.f32 %v463, %v751
        %v758 = vmul.f32 %v468, %v751
        %v759 = vmul.f32 %v473, %v751
        %v760 = vmul.f32 %v478, %v751
        %v761 = vmul.f32 %v483, %v751
        %v762 = vmul.f32 %v488, %v751
        %v763 = vmul.f32 %v493, %v751
        %v764 = vmul.f32 %v498, %v751
        %v765 = vmul.f32 %v503, %v751
        %v766 = vmul.f32 %v508, %v751
        %v767 = vmul.f32 %v513, %v751
        %v768 = vmul.f32 %v518, %v751
        %v770 = vlaneseq
        %v771 = vshrl.u32 %v770, 7
        %v772 = vsub.s32 0, %v771
        %v773 = vrot.slane %v746, %v772
        %v775 = vadd.f32 %v753, %v773
        %v776 = vadd.f32 %v754, %v773
        %v777 = vadd.f32 %v755, %v773
        %v778 = vadd.f32 %v756, %v773
        %v779 = vadd.f32 %v757, %v773
        %v780 = vadd.f32 %v758, %v773
        %v781 = vadd.f32 %v759, %v773
        %v782 = vadd.f32 %v760, %v773
        %v783 = vadd.f32 %v761, %v773
        %v784 = vadd.f32 %v762, %v773
        %v785 = vadd.f32 %v763, %v773
        %v786 = vadd.f32 %v764, %v773
        %v787 = vadd.f32 %v765, %v773
        %v788 = vadd.f32 %v766, %v773
        %v789 = vadd.f32 %v767, %v773
        %v790 = vadd.f32 %v768, %v773
        %v791 = vmax.f32 %v775, 0.0
        %v792 = vmax.f32 %v776, 0.0
        %v793 = vmax.f32 %v777, 0.0
        %v794 = vmax.f32 %v778, 0.0
        %v795 = vmax.f32 %v779, 0.0
        %v796 = vmax.f32 %v780, 0.0
        %v797 = vmax.f32 %v781, 0.0
        %v798 = vmax.f32 %v782, 0.0
        %v799 = vmax.f32 %v783, 0.0
        %v800 = vmax.f32 %v784, 0.0
        %v801 = vmax.f32 %v785, 0.0
        %v802 = vmax.f32 %v786, 0.0
        %v803 = vmax.f32 %v787, 0.0
        %v804 = vmax.f32 %v788, 0.0
        %v805 = vmax.f32 %v789, 0.0
        %v806 = vmax.f32 %v790, 0.0
        %v807 = vld [vmem:[%s5] sm:$0x1]
        %v809 = vlaneseq
        %v810 = vshrl.u32 %v809, 7
        %v811 = vsub.s32 0, %v810
        %v812 = vrot.slane %v807, %v811
        %v814 = vmul.f32 %v791, %v812
        %v815 = vmul.f32 %v792, %v812
        %v816 = vmul.f32 %v793, %v812
        %v817 = vmul.f32 %v794, %v812
        %v818 = vmul.f32 %v795, %v812
        %v819 = vmul.f32 %v796, %v812
        %v820 = vmul.f32 %v797, %v812
        %v821 = vmul.f32 %v798, %v812
        %v822 = vmul.f32 %v799, %v812
        %v823 = vmul.f32 %v800, %v812
        %v824 = vmul.f32 %v801, %v812
        %v825 = vmul.f32 %v802, %v812
        %v826 = vmul.f32 %v803, %v812
        %v827 = vmul.f32 %v804, %v812
        %v828 = vmul.f32 %v805, %v812
        %v829 = vmul.f32 %v806, %v812
        %vm830 = vcmask 80896
        %v831 = vsel %vm830, %v814, 0.0
        %832 = vadd.xlane.f32.xlu0 %v831
        %v833 = vpop.xlane.xlu0 %832
        %v834 = vsel %vm830, %v815, 0.0
        %835 = vadd.xlane.f32.xlu0 %v834
        %v836 = vpop.xlane.xlu0 %835
        %v837 = vsel %vm830, %v816, 0.0
        %838 = vadd.xlane.f32.xlu0 %v837
        %v839 = vpop.xlane.xlu0 %838
        %v840 = vsel %vm830, %v817, 0.0
        %841 = vadd.xlane.f32.xlu0 %v840
        %v842 = vpop.xlane.xlu0 %841
        %v843 = vsel %vm830, %v818, 0.0
        %844 = vadd.xlane.f32.xlu0 %v843
        %v845 = vpop.xlane.xlu0 %844
        %v846 = vsel %vm830, %v819, 0.0
        %847 = vadd.xlane.f32.xlu0 %v846
        %v848 = vpop.xlane.xlu0 %847
        %v849 = vsel %vm830, %v820, 0.0
        %850 = vadd.xlane.f32.xlu0 %v849
        %v851 = vpop.xlane.xlu0 %850
        %v852 = vsel %vm830, %v821, 0.0
        %853 = vadd.xlane.f32.xlu0 %v852
        %v854 = vpop.xlane.xlu0 %853
        %v855 = vsel %vm830, %v822, 0.0
        %856 = vadd.xlane.f32.xlu0 %v855
        %v857 = vpop.xlane.xlu0 %856
        %v858 = vsel %vm830, %v823, 0.0
        %859 = vadd.xlane.f32.xlu0 %v858
        %v860 = vpop.xlane.xlu0 %859
        %v861 = vsel %vm830, %v824, 0.0
        %862 = vadd.xlane.f32.xlu0 %v861
        %v863 = vpop.xlane.xlu0 %862
        %v864 = vsel %vm830, %v825, 0.0
        %865 = vadd.xlane.f32.xlu0 %v864
        %v866 = vpop.xlane.xlu0 %865
        %v867 = vsel %vm830, %v826, 0.0
        %868 = vadd.xlane.f32.xlu0 %v867
        %v869 = vpop.xlane.xlu0 %868
        %v870 = vsel %vm830, %v827, 0.0
        %871 = vadd.xlane.f32.xlu0 %v870
        %v872 = vpop.xlane.xlu0 %871
        %v873 = vsel %vm830, %v828, 0.0
        %874 = vadd.xlane.f32.xlu0 %v873
        %v875 = vpop.xlane.xlu0 %874
        %v876 = vsel %vm830, %v829, 0.0
        %877 = vadd.xlane.f32.xlu0 %v876
        %v878 = vpop.xlane.xlu0 %877
        %v879 = vld [vmem:[#allocation4] sm:$0x1]
        %v881 = vlaneseq
        %v882 = vshrl.u32 %v881, 7
        %v883 = vsub.s32 0, %v882
        %v884 = vrot.slane %v879, %v883
        %v886 = vadd.f32 %v833, %v884
        %v887 = vadd.f32 %v836, %v884
        %v888 = vadd.f32 %v839, %v884
        %v889 = vadd.f32 %v842, %v884
        %v890 = vadd.f32 %v845, %v884
        %v891 = vadd.f32 %v848, %v884
        %v892 = vadd.f32 %v851, %v884
        %v893 = vadd.f32 %v854, %v884
        %v894 = vadd.f32 %v857, %v884
        %v895 = vadd.f32 %v860, %v884
        %v896 = vadd.f32 %v863, %v884
        %v897 = vadd.f32 %v866, %v884
        %v898 = vadd.f32 %v869, %v884
        %v899 = vadd.f32 %v872, %v884
        %v900 = vadd.f32 %v875, %v884
        %v901 = vadd.f32 %v878, %v884
        %vm902 = vcmask 7168
        %903 = vst.msk [vmem:[%s294] sm:$0xff] %vm902, %v886
        %904 = vst.msk [vmem:[%s294 + $0x8] sm:$0xff] %vm902, %v887
        %905 = vst.msk [vmem:[%s294 + $0x10] sm:$0xff] %vm902, %v888
        %906 = vst.msk [vmem:[%s294 + $0x18] sm:$0xff] %vm902, %v889
        %907 = vst.msk [vmem:[%s294 + $0x20] sm:$0xff] %vm902, %v890
        %908 = vst.msk [vmem:[%s294 + $0x28] sm:$0xff] %vm902, %v891
        %909 = vst.msk [vmem:[%s294 + $0x30] sm:$0xff] %vm902, %v892
        %910 = vst.msk [vmem:[%s294 + $0x38] sm:$0xff] %vm902, %v893
        %911 = vst.msk [vmem:[%s294 + $0x40] sm:$0xff] %vm902, %v894
        %912 = vst.msk [vmem:[%s294 + $0x48] sm:$0xff] %vm902, %v895
        %913 = vst.msk [vmem:[%s294 + $0x50] sm:$0xff] %vm902, %v896
        %914 = vst.msk [vmem:[%s294 + $0x58] sm:$0xff] %vm902, %v897
        %915 = vst.msk [vmem:[%s294 + $0x60] sm:$0xff] %vm902, %v898
        %916 = vst.msk [vmem:[%s294 + $0x68] sm:$0xff] %vm902, %v899
        %917 = vst.msk [vmem:[%s294 + $0x70] sm:$0xff] %vm902, %v900
        %918 = vst.msk [vmem:[%s294 + $0x78] sm:$0xff] %vm902, %v901
      $region60: #{tpu_custom_call.1} parent=47 // pred_fallthru
        _
      %s919 = smul.u32 16, %s25
      %p920 = scmp.lt.s32.totalorder %s919, 31
      %s921 = scalar_select %p920, %s919, 31
      %s922 = smul.addr %s921, 8
      %s923 = scalar_lea.vmem %s7, %s922
      // Predicated region
      $region61: #{tpu_custom_call.1} parent=47 // pred_check
        %p924 = pneg %p202
      $region62: #{tpu_custom_call.1} parent=47 // pred_check_branch
        %926 = sbr.rel (%p924) target = $region64
      $region63: #{tpu_custom_call.1} parent=47 // pred_region
        %s927 = smul.u32 16, %s25
      $region64: #{tpu_custom_call.1} parent=47 // pred_fallthru
        _
    $region48: #{tpu_custom_call.1} parent=5 // pred_fallthru
      _
    %p928 = scmp.le.s32.totalorder 2, %s15
    // Predicated region
    $region65: #{tpu_custom_call.1} parent=5 // pred_check
      %p929 = pneg %p928
    $region66: #{tpu_custom_call.1} parent=5 // pred_check_branch
      %931 = sbr.rel (%p929) target = $region68
    $region67: #{tpu_custom_call.1} parent=5 // pred_region
      %s932 = ssub.s32 %s15, 2
      // Predicated region
      $region69: #{tpu_custom_call.1} parent=67 // pred_check
        %p933 = pneg %p208
      $region70: #{tpu_custom_call.1} parent=67 // pred_check_branch
        %935 = sbr.rel (%p933) target = $region72
      $region71: #{tpu_custom_call.1} parent=67 // pred_region
        %s936 = smul.u32 16, %s27
        %p937 = scmp.lt.s32.totalorder %s936, 31
        %s938 = scalar_select %p937, %s936, 31
        %s939 = smul.addr %s938, 8
        %s940 = scalar_lea.vmem %s7, %s939
      $region72: #{tpu_custom_call.1} parent=67 // pred_fallthru
        _
    $region68: #{tpu_custom_call.1} parent=5 // pred_fallthru
      _
  $region6: #{tpu_custom_call.1} parent=0 // loop_footer
    %s19 = sadd.s32 1, %s15
  $region7: #{tpu_custom_call.1} parent=0 // loop_footer_branch
    %14 = sbr.rel target = $region3
  $region8: #{tpu_custom_call.1} parent=0 // loop_exit
    _

</llo_original>
